<compile_context>
chip_gen: v6e
topology: v6e:2x2x1
jax: 0.10.0
libtpu: 0.0.40
codegen_flags: <defaults>
</compile_context>

<pallas_src>
import functools

import jax
import jax.numpy as jnp
from jax.experimental import pallas as pl
from jax.experimental.pallas import tpu as pltpu

_LANE = 128


def _round_up(x, m):
    return ((x + m - 1) // m) * m


def _cdiv(a, b):
    return (a + b - 1) // b


def _packed_sublane(dtype):
    # Packed-vreg row multiple: 8 for f32, 16 for bf16, 32 for int8/fp8.
    return max(8, 32 // jnp.dtype(dtype).itemsize)


def _choose_tn(hidden):
    # Stream the pooler output dim in the largest 128-aligned chunk dividing H.
    for tn in (512, 256, 128):
        if hidden % tn == 0:
            return tn
    return hidden  # tiny / odd H: single chunk (block == full array dim, legal)


def _distill_cls_kernel(x0_ref, wp_ref, bp_ref, wc_ref, bc_ref, out_ref, acc_ref):
    """One (batch tile i, pooler-output chunk n) grid step.

    x0_ref : (TB, H)       first-token activations, batch tile i (resident over n)
    wp_ref : (H, TN)       pooler weight columns for chunk n, [in, out]
    bp_ref : (1, TN)       pooler bias chunk n
    wc_ref : (TN, C_pad)   classifier weight rows for chunk n, [in, out]
    bc_ref : (1, C_pad)    classifier bias (lane-padded)
    out_ref: (TB, C_pad)   logits, written on the last n step
    acc_ref: (TB, C_pad)   f32 VMEM accumulator
    """
    n = pl.program_id(1)

    @pl.when(n == 0)
    def _():
        acc_ref[...] = jnp.zeros_like(acc_ref)

    # Pooler chunk: tanh(x0 @ Wp[:, chunk n] + bp[chunk n])  -> (TB, TN) f32
    pooled = jnp.tanh(
        jnp.dot(x0_ref[...], wp_ref[...], preferred_element_type=jnp.float32)
        + bp_ref[...].astype(jnp.float32)
    )

    # Classifier partial sum: pooled_chunk @ Wc[chunk n, :]
    acc_ref[...] += jnp.dot(pooled.astype(wc_ref.dtype), wc_ref[...],
                            preferred_element_type=jnp.float32)

    @pl.when(n == pl.num_programs(1) - 1)
    def _():
        out_ref[...] = (
            acc_ref[...] + bc_ref[...].astype(jnp.float32)
        ).astype(out_ref.dtype)


def prepare_params(w_pool, b_pool, w_cls, b_cls, param_dtype=jnp.float32):
    """One-time parameter prep (outside the per-call hot path).

    w_pool : (H, H)  PyTorch Linear weight [out, in]
    b_pool : (H,)
    w_cls  : (C, H)  PyTorch Linear weight [out, in]
    b_cls  : (C,)
    Returns weights pre-transposed to [in, out], classifier padded to a
    128-lane-dense C_pad, biases as 2-D rows.  For bf16 inference pass
    param_dtype=jnp.bfloat16 (activations are cast to match in the wrapper).
    """
    H = w_pool.shape[0]
    C = w_cls.shape[0]
    C_pad = _round_up(C, _LANE)

    wp_t = jnp.asarray(w_pool, param_dtype).T                      # (H, H)
    bp_2d = jnp.asarray(b_pool, param_dtype).reshape(1, H)         # (1, H)

    wc_t = jnp.zeros((H, C_pad), param_dtype)
    wc_t = wc_t.at[:, :C].set(jnp.asarray(w_cls, param_dtype).T)   # (H, C_pad)
    bc_2d = jnp.zeros((1, C_pad), param_dtype)
    bc_2d = bc_2d.at[:, :C].set(jnp.asarray(b_cls, param_dtype).reshape(1, C))

    return wp_t, bp_2d, wc_t, bc_2d, C


@functools.partial(jax.jit, static_argnames=("num_class",))
def _forward_impl(x0, wp_t, bp_2d, wc_t, bc_2d, num_class):
    B = x0.shape[0]
    H = wp_t.shape[0]
    C_pad = wc_t.shape[1]

    # Both matmul operands in the params' dtype (true bf16 MXU pass for bf16).
    x0 = x0.astype(wp_t.dtype)

    # Batch tile: packed-sublane multiple, <=128 rows (>=2 tiles for large B so
    # the v7x megacore "parallel" axis shards work), minimal padding.
    sub = _packed_sublane(x0.dtype)
    n_b = max(1, _cdiv(B, 128))
    TB = _round_up(_cdiv(B, n_b), sub)
    B_pad = _round_up(B, TB)
    if B_pad != B:
        x0 = jnp.pad(x0, ((0, B_pad - B), (0, 0)))

    TN = _choose_tn(H)
    grid = (B_pad // TB, H // TN)

    itemsize = jnp.dtype(wp_t.dtype).itemsize
    cost = pl.CostEstimate(
        flops=2 * B_pad * H * (H + C_pad),
        transcendentals=B_pad * H,
        bytes_accessed=(B_pad * H + H * H + H + H * C_pad + C_pad) * itemsize
        + B_pad * C_pad * 4,
    )

    logits_pad = pl.pallas_call(
        _distill_cls_kernel,
        out_shape=jax.ShapeDtypeStruct((B_pad, C_pad), jnp.float32),
        grid=grid,
        in_specs=[
            pl.BlockSpec((TB, H), lambda i, n: (i, 0)),      # x0 (resident over n)
            pl.BlockSpec((H, TN), lambda i, n: (0, n)),      # pooler weight chunk
            pl.BlockSpec((1, TN), lambda i, n: (0, n)),      # pooler bias chunk
            pl.BlockSpec((TN, C_pad), lambda i, n: (n, 0)),  # classifier wt chunk
            pl.BlockSpec((1, C_pad), lambda i, n: (0, 0)),   # classifier bias
        ],
        out_specs=pl.BlockSpec((TB, C_pad), lambda i, n: (i, 0)),
        scratch_shapes=[pltpu.VMEM((TB, C_pad), jnp.float32)],
        compiler_params=pltpu.CompilerParams(
            dimension_semantics=("parallel", "arbitrary"),
            vmem_limit_bytes=32 * 1024 * 1024,
        ),
        cost_estimate=cost,
    )(x0, wp_t, bp_2d, wc_t, bc_2d)

    # Drop batch padding and classifier lane padding.
    return logits_pad[:B, :num_class]


def distill_classification_forward(hidden_states, params):
    """Equivalent to DistillClassification.forward(...)[0] when label_dict is None.

    hidden_states : (B, S, H) sequence output
    params        : output of prepare_params(...)
    """
    wp_t, bp_2d, wc_t, bc_2d, C = params
    # First-token selection in the wrapper: only a (B, H) slab reaches the kernel.
    x0 = hidden_states[:, 0, :]
    logits = _forward_impl(x0, wp_t, bp_2d, wc_t, bc_2d, C)
    return [logits]


def _reference_forward(hidden_states, w_pool, b_pool, w_cls, b_cls):
    x0 = hidden_states[:, 0]
    pooled = jnp.tanh(x0 @ w_pool.T + b_pool)
    return pooled @ w_cls.T + b_cls


if __name__ == "__main__":
    # Small shapes: batch=2, seq=8, hidden=32, num_class=4
    B, S, H, C = 2, 8, 32, 4

    key = jax.random.PRNGKey(0)
    k_hs, k_wp, k_bp, k_wc, k_bc = jax.random.split(key, 5)

    hidden_states = jax.random.normal(k_hs, (B, S, H), dtype=jnp.float32)

    # Deterministic synthetic parameters (PyTorch Linear shapes: [out, in]).
    w_pool = jax.random.normal(k_wp, (H, H), dtype=jnp.float32) * 0.05
    b_pool = jax.random.normal(k_bp, (H,), dtype=jnp.float32) * 0.05
    w_cls = jax.random.normal(k_wc, (C, H), dtype=jnp.float32) * 0.05
    b_cls = jax.random.normal(k_bc, (C,), dtype=jnp.float32) * 0.05

    ref = _reference_forward(hidden_states, w_pool, b_pool, w_cls, b_cls)

    # --- f32 path (exact-ish vs reference) ---
    params_f32 = prepare_params(w_pool, b_pool, w_cls, b_cls)
    out = distill_classification_forward(hidden_states, params_f32)
    logits = jax.block_until_ready(out[0])
    assert logits.shape == (B, C)
    assert jnp.allclose(logits, ref, atol=1e-5, rtol=1e-5)

    # --- bf16 inference path (looser tolerance: pooled is rounded to bf16) ---
    params_bf16 = prepare_params(w_pool, b_pool, w_cls, b_cls,
                                 param_dtype=jnp.bfloat16)
    out_bf16 = distill_classification_forward(hidden_states, params_bf16)
    logits_bf16 = jax.block_until_ready(out_bf16[0])
    assert logits_bf16.shape == (B, C)
    assert jnp.allclose(logits_bf16, ref, atol=3e-2, rtol=3e-2)

    print("KERNEL_OK")
</pallas_src>

<mosaic_0001>
module attributes {stable_mosaic.version = 11 : i64} {
  func.func @_distill_cls_kernel(%arg0: i32, %arg1: i32, %arg2: memref<8x32xf32, #tpu.memory_space<vmem>>, %arg3: memref<32x32xf32, #tpu.memory_space<vmem>>, %arg4: memref<1x32xf32, #tpu.memory_space<vmem>>, %arg5: memref<32x128xf32, #tpu.memory_space<vmem>>, %arg6: memref<1x128xf32, #tpu.memory_space<vmem>>, %arg7: memref<8x128xf32, #tpu.memory_space<vmem>>, %arg8: memref<8x128xf32, #tpu.memory_space<vmem>>) attributes {dimension_semantics = [#tpu.dimension_semantics<parallel>, #tpu.dimension_semantics<arbitrary>], iteration_bounds = array<i64: 1, 1>, scalar_prefetch = 0 : i64, scratch_operands = 1 : i64, tpu.core_type = #tpu.core_type<tc>, window_params = [{transform_indices = @transform_0, window_bounds = array<i64: 8, 32>}, {transform_indices = @transform_1, window_bounds = array<i64: 32, 32>}, {transform_indices = @transform_2, window_bounds = array<i64: 1, 32>}, {transform_indices = @transform_3, window_bounds = array<i64: 32, 128>}, {pipeline_mode = #tpu.pipeline_mode<synchronous>, transform_indices = @transform_4, window_bounds = array<i64: 1, 128>}, {transform_indices = @transform_5, window_bounds = array<i64: 8, 128>}]} {
    %c0_i32 = arith.constant 0 : i32
    %0 = arith.cmpi eq, %arg1, %c0_i32 : i32
    %1 = arith.extui %0 : i1 to i32
    %c0_i32_0 = arith.constant 0 : i32
    %2 = arith.cmpi ne, %1, %c0_i32_0 : i32
    scf.if %2 {
      %cst_15 = arith.constant 0.000000e+00 : f32
      %18 = vector.broadcast %cst_15 : f32 to vector<8x128xf32>
      %c0_16 = arith.constant 0 : index
      %c0_17 = arith.constant 0 : index
      %19 = vector.load %arg8[%c0_16, %c0_17] : memref<8x128xf32, #tpu.memory_space<vmem>>, vector<8x128xf32>
      tpu.vector_store %arg8[%c0_16, %c0_17], %18 {strides = array<i32>} : memref<8x128xf32, #tpu.memory_space<vmem>>, vector<8x128xf32>,
    } else {
    }
    %c0 = arith.constant 0 : index
    %c0_1 = arith.constant 0 : index
    %3 = vector.load %arg2[%c0, %c0_1] : memref<8x32xf32, #tpu.memory_space<vmem>>, vector<8x32xf32>
    %c0_2 = arith.constant 0 : index
    %c0_3 = arith.constant 0 : index
    %4 = vector.load %arg3[%c0_2, %c0_3] : memref<32x32xf32, #tpu.memory_space<vmem>>, vector<32x32xf32>
    %cst = arith.constant dense<0.000000e+00> : vector<8x32xf32>
    %5 = tpu.matmul %3, %4, %cst {dimension_numbers = #tpu.dot_dimension_numbers<[1], [0], [0], [1], [0, 0, 1, 1], [], []>} : vector<8x32xf32>, vector<32x32xf32>, vector<8x32xf32> -> vector<8x32xf32>
    %c0_4 = arith.constant 0 : index
    %c0_5 = arith.constant 0 : index
    %6 = vector.load %arg4[%c0_4, %c0_5] : memref<1x32xf32, #tpu.memory_space<vmem>>, vector<1x32xf32>
    %7 = vector.broadcast %6 : vector<1x32xf32> to vector<8x32xf32>
    %8 = arith.addf %5, %7 : vector<8x32xf32>
    %9 = math.tanh %8 : vector<8x32xf32>
    %c0_6 = arith.constant 0 : index
    %c0_7 = arith.constant 0 : index
    %10 = vector.load %arg8[%c0_6, %c0_7] : memref<8x128xf32, #tpu.memory_space<vmem>>, vector<8x128xf32>
    %c0_8 = arith.constant 0 : index
    %c0_9 = arith.constant 0 : index
    %11 = vector.load %arg5[%c0_8, %c0_9] : memref<32x128xf32, #tpu.memory_space<vmem>>, vector<32x128xf32>
    %cst_10 = arith.constant dense<0.000000e+00> : vector<8x128xf32>
    %12 = tpu.matmul %9, %11, %cst_10 {dimension_numbers = #tpu.dot_dimension_numbers<[1], [0], [0], [1], [0, 0, 1, 1], [], []>} : vector<8x32xf32>, vector<32x128xf32>, vector<8x128xf32> -> vector<8x128xf32>
    %13 = arith.addf %10, %12 : vector<8x128xf32>
    %c0_11 = arith.constant 0 : index
    %c0_12 = arith.constant 0 : index
    %14 = vector.load %arg8[%c0_11, %c0_12] : memref<8x128xf32, #tpu.memory_space<vmem>>, vector<8x128xf32>
    tpu.vector_store %arg8[%c0_11, %c0_12], %13 {strides = array<i32>} : memref<8x128xf32, #tpu.memory_space<vmem>>, vector<8x128xf32>,
    %c0_i32_13 = arith.constant 0 : i32
    %15 = arith.cmpi eq, %arg1, %c0_i32_13 : i32
    %16 = arith.extui %15 : i1 to i32
    %c0_i32_14 = arith.constant 0 : i32
    %17 = arith.cmpi ne, %16, %c0_i32_14 : i32
    scf.if %17 {
      %c0_15 = arith.constant 0 : index
      %c0_16 = arith.constant 0 : index
      %18 = vector.load %arg8[%c0_15, %c0_16] : memref<8x128xf32, #tpu.memory_space<vmem>>, vector<8x128xf32>
      %c0_17 = arith.constant 0 : index
      %c0_18 = arith.constant 0 : index
      %19 = vector.load %arg6[%c0_17, %c0_18] : memref<1x128xf32, #tpu.memory_space<vmem>>, vector<1x128xf32>
      %20 = vector.broadcast %19 : vector<1x128xf32> to vector<8x128xf32>
      %21 = arith.addf %18, %20 : vector<8x128xf32>
      %c0_19 = arith.constant 0 : index
      %c0_20 = arith.constant 0 : index
      %22 = vector.load %arg7[%c0_19, %c0_20] : memref<8x128xf32, #tpu.memory_space<vmem>>, vector<8x128xf32>
      tpu.vector_store %arg7[%c0_19, %c0_20], %21 {strides = array<i32>} : memref<8x128xf32, #tpu.memory_space<vmem>>, vector<8x128xf32>,
    } else {
    }
    return
  }
  func.func @transform_0(%arg0: i32, %arg1: i32) -> (i32, i32) {
    %c0_i32 = arith.constant 0 : i32
    %c0_i32_0 = arith.constant 0 : i32
    return %arg0, %c0_i32 : i32, i32
  }
  func.func @transform_1(%arg0: i32, %arg1: i32) -> (i32, i32) {
    %c0_i32 = arith.constant 0 : i32
    %c0_i32_0 = arith.constant 0 : i32
    return %c0_i32, %arg1 : i32, i32
  }
  func.func @transform_2(%arg0: i32, %arg1: i32) -> (i32, i32) {
    %c0_i32 = arith.constant 0 : i32
    %c0_i32_0 = arith.constant 0 : i32
    return %c0_i32, %arg1 : i32, i32
  }
  func.func @transform_3(%arg0: i32, %arg1: i32) -> (i32, i32) {
    %c0_i32 = arith.constant 0 : i32
    %c0_i32_0 = arith.constant 0 : i32
    return %arg1, %c0_i32 : i32, i32
  }
  func.func @transform_4(%arg0: i32, %arg1: i32) -> (i32, i32) {
    %c0_i32 = arith.constant 0 : i32
    %c0_i32_0 = arith.constant 0 : i32
    %c0_i32_1 = arith.constant 0 : i32
    return %c0_i32, %c0_i32_0 : i32, i32
  }
  func.func @transform_5(%arg0: i32, %arg1: i32) -> (i32, i32) {
    %c0_i32 = arith.constant 0 : i32
    %c0_i32_0 = arith.constant 0 : i32
    return %arg0, %c0_i32 : i32, i32
  }
}

</mosaic_0001>

<llo_original>
// kernel: _forward_impl.1
$region0: #{_forward_impl.1}
  #allocation0 [shape = 'u32[]', space=smem, size = 0x4, offset = 0x4, fixed_abs, tag = 'smem constant byte address 0x4 - core index']
  #allocation1 [shape = 'u32[144,128]{1,0:T(1,128)}', space=vmem, size = 0x12000, scoped, tag = 'internal scratch']
  #allocation2 [shape = 'f32[8,128]{1,0:T(8,128)}', space=vmem, size = 0x1000, scoped, tag = 'scratch operand']
  %s0 = inlined_call_operand.vmem [shape: f32[8,32], index: 0, kind: input, shape index: {}]
  %s1 = inlined_call_operand.hbm [shape: f32[32,32], index: 1, kind: input, shape index: {}]
  %s2 = inlined_call_operand.vmem [shape: f32[1,32], index: 2, kind: input, shape index: {}]
  %s3 = inlined_call_operand.hbm [shape: f32[32,128], index: 3, kind: input, shape index: {}]
  %s4 = inlined_call_operand.vmem [shape: f32[1,128], index: 4, kind: input, shape index: {}]
  %s5 = inlined_call_operand.vmem [shape: f32[8,128], index: 5, kind: output, shape index: {}]
  %s6 = sld [smem:[#allocation0]]
  $region46: #{_forward_impl.1} parent=0
    _
  %s8 = ssub.s32 1, %s6
  %s9 = scalar_select 0, %s8, %s6
  $region1: #{_forward_impl.1} parent=0
    #allocation3 [shape = 'u8[16384]{0}', space=vmem, size = 0x4000, scoped, tag = 'input window, operand 1, single buffered']
    #allocation4 [shape = 's32[1]{0}', space=sflag, size = 0x4, scoped, tag = 'scoped memory for _forward_impl.1']
    #allocation5 [shape = 'u8[16384]{0}', space=vmem, size = 0x4000, scoped, tag = 'input window, operand 3, single buffered']
    #allocation6 [shape = 's32[1]{0}', space=sflag, size = 0x4, scoped, tag = 'scoped memory for _forward_impl.1']
    %10 = vsyncpa [#allocation4], 0
    %11 = vsyncpa [#allocation6], 0
    // Predicated region
    $region2: #{_forward_impl.1} parent=1 // pred_check
      _
    $region3: #{_forward_impl.1} parent=1 // pred_check_branch
      %13 = sbr.rel (0) target = $region5
    $region4: #{_forward_impl.1} parent=1 // pred_region
      _
    $region5: #{_forward_impl.1} parent=1 // pred_fallthru
      _
    // Predicated region
    $region6: #{_forward_impl.1} parent=1 // pred_check
      _
    $region7: #{_forward_impl.1} parent=1 // pred_check_branch
      %15 = sbr.rel (0) target = $region9
    $region8: #{_forward_impl.1} parent=1 // pred_region
      %s17 = ssub.s32 512, 512
      %18 = vsyncadd [#allocation4], %s17
      %s19 = sshll.u32 [#allocation3], 4
      %s20 = int_to_ptr.vmem [resolvable:$true] %s19
      %25 = dma.hbm_to_vmem [thread:$0]  %s1, 512, %s20, [#allocation4], 128, 128, 8
    $region9: #{_forward_impl.1} parent=1 // pred_fallthru
      _
    // Predicated region
    $region10: #{_forward_impl.1} parent=1 // pred_check
      _
    $region11: #{_forward_impl.1} parent=1 // pred_check_branch
      %27 = sbr.rel (0) target = $region13
    $region12: #{_forward_impl.1} parent=1 // pred_region
      _
    $region13: #{_forward_impl.1} parent=1 // pred_fallthru
      _
    // Predicated region
    $region14: #{_forward_impl.1} parent=1 // pred_check
      _
    $region15: #{_forward_impl.1} parent=1 // pred_check_branch
      %29 = sbr.rel (0) target = $region17
    $region16: #{_forward_impl.1} parent=1 // pred_region
      %s31 = ssub.s32 512, 512
      %32 = vsyncadd [#allocation6], %s31
      %s33 = sshll.u32 [#allocation5], 4
      %s34 = int_to_ptr.vmem [resolvable:$true] %s33
      %39 = dma.hbm_to_vmem [thread:$0]  %s3, 512, %s34, [#allocation6], 128, 128, 8
    $region17: #{_forward_impl.1} parent=1 // pred_fallthru
      _
    // Predicated region
    $region18: #{_forward_impl.1} parent=1 // pred_check
      _
    $region19: #{_forward_impl.1} parent=1 // pred_check_branch
      %41 = sbr.rel (0) target = $region21
    $region20: #{_forward_impl.1} parent=1 // pred_region
      _
    $region21: #{_forward_impl.1} parent=1 // pred_fallthru
      _
    // Predicated region
    $region22: #{_forward_impl.1} parent=1 // pred_check
      _
    $region23: #{_forward_impl.1} parent=1 // pred_check_branch
      %43 = sbr.rel (0) target = $region25
    $region24: #{_forward_impl.1} parent=1 // pred_region
      %44 = dma.done [#allocation4], 512
    $region25: #{_forward_impl.1} parent=1 // pred_fallthru
      _
    // Predicated region
    $region26: #{_forward_impl.1} parent=1 // pred_check
      _
    $region27: #{_forward_impl.1} parent=1 // pred_check_branch
      %46 = sbr.rel (0) target = $region29
    $region28: #{_forward_impl.1} parent=1 // pred_region
      %47 = dma.done [#allocation6], 512
    $region29: #{_forward_impl.1} parent=1 // pred_fallthru
      _
    %p48 = scmp.eq.s32.totalorder 0, 0
    // Predicated region
    $region30: #{_forward_impl.1} parent=1 // pred_check
      %p49 = pneg %p48
    $region31: #{_forward_impl.1} parent=1 // pred_check_branch
      %51 = sbr.rel (%p49) target = $region33
    $region32: #{_forward_impl.1} parent=1 // pred_region
      %52 = vst [vmem:[#allocation2] sm:$0xff] 0.0
    $region33: #{_forward_impl.1} parent=1 // pred_fallthru
      _
    %v53 = vld [vmem:[%s0] sm:$0xff]
    %v54 = vld [vmem:[#allocation3] sm:$0xff]
    %v55 = vld [vmem:[#allocation3 + $0x8] sm:$0xff]
    %v56 = vld [vmem:[#allocation3 + $0x10] sm:$0xff]
    %v57 = vld [vmem:[#allocation3 + $0x18] sm:$0xff]
    %v58 = vld [vmem:[%s2] sm:$0x1]
    %v60 = vlaneseq
    %v61 = vshrl.u32 %v60, 7
    %v62 = vsub.s32 0, %v61
    %v63 = vrot.slane %v58, %v62
    %vm65 = vcmask 261120
    %v67 = vsel %vm65, %v53, 0
    %69 = vmatprep.subr.mxu0 0.0
    %70 = vmatpush1.msra.mxu0 0.0
    %71 = vmatprep.subr.mxu0 0.0
    %72 = vmatpush1.msra.mxu0 0.0
    %73 = vmatprep.subr.mxu0 0.0
    %74 = vmatpush1.msra.mxu0 0.0
    %75 = vmatprep.subr.mxu0 0.0
    %76 = vmatpush1.msra.mxu0 0.0
    %77 = vmatprep.subr.mxu0 0.0
    %78 = vmatpush1.msra.mxu0 0.0
    %79 = vmatprep.subr.mxu0 0.0
    %80 = vmatpush1.msra.mxu0 0.0
    %81 = vmatprep.subr.mxu0 0.0
    %82 = vmatpush1.msra.mxu0 0.0
    %83 = vmatprep.subr.mxu0 0.0
    %84 = vmatpush1.msra.mxu0 0.0
    %85 = vmatprep.subr.mxu0 0.0
    %86 = vmatpush1.msra.mxu0 0.0
    %87 = vmatprep.subr.mxu0 0.0
    %88 = vmatpush1.msra.mxu0 0.0
    %89 = vmatprep.subr.mxu0 0.0
    %90 = vmatpush1.msra.mxu0 0.0
    %91 = vmatprep.subr.mxu0 0.0
    %92 = vmatpush1.msra.mxu0 0.0
    %93 = vmatprep.subr.mxu0 0.0
    %94 = vmatpush1.msra.mxu0 %v57
    %95 = vmatprep.subr.mxu0 0.0
    %96 = vmatpush1.msra.mxu0 %v56
    %97 = vmatprep.subr.mxu0 0.0
    %98 = vmatpush1.msra.mxu0 %v55
    %99 = vmatprep.subr.mxu0 0.0
    %100 = vmatpush1.msra.mxu0 %v54
    %101 = vmatprep.subr.mxu0 0.0
    %102 = vmatpush2.msra.mxu0 0.0
    %103 = vmatprep.subr.mxu0 0.0
    %104 = vmatpush2.msra.mxu0 0.0
    %105 = vmatprep.subr.mxu0 0.0
    %106 = vmatpush2.msra.mxu0 0.0
    %107 = vmatprep.subr.mxu0 0.0
    %108 = vmatpush2.msra.mxu0 0.0
    %109 = vmatprep.subr.mxu0 0.0
    %110 = vmatpush2.msra.mxu0 0.0
    %111 = vmatprep.subr.mxu0 0.0
    %112 = vmatpush2.msra.mxu0 0.0
    %113 = vmatprep.subr.mxu0 0.0
    %114 = vmatpush2.msra.mxu0 0.0
    %115 = vmatprep.subr.mxu0 0.0
    %116 = vmatpush2.msra.mxu0 0.0
    %117 = vmatprep.subr.mxu0 0.0
    %118 = vmatpush2.msra.mxu0 0.0
    %119 = vmatprep.subr.mxu0 0.0
    %120 = vmatpush2.msra.mxu0 0.0
    %121 = vmatprep.subr.mxu0 0.0
    %122 = vmatpush2.msra.mxu0 0.0
    %123 = vmatprep.subr.mxu0 0.0
    %124 = vmatpush2.msra.mxu0 0.0
    %125 = vmatprep.subr.mxu0 0.0
    %126 = vmatpush2.msra.mxu0 0.0
    %127 = vmatprep.subr.mxu0 0.0
    %128 = vmatpush2.msra.mxu0 0.0
    %129 = vmatprep.subr.mxu0 0.0
    %130 = vmatpush2.msra.mxu0 0.0
    %131 = vmatprep.subr.mxu0 0.0
    %132 = vmatpush2.msra.mxu0 0.0
    %133 = vmatprep.mubr.f32.mxu0 0.0
    %134 = vmatmul.mubr.f32.gmra.mxu0 %v67
    %v135 = vpop.f32.mrf.mxu0
    %v136 = vadd.f32 %v63, %v135
    %v137 = vpop.f32.mrf.mxu0
    %138 = vdwg.mxu0
    %v139 = vtanh.pop %v136
    %v140 = vld [vmem:[#allocation2] sm:$0xff]
    %v141 = vld [vmem:[#allocation5] sm:$0xff]
    %v142 = vld [vmem:[#allocation5 + $0x8] sm:$0xff]
    %v143 = vld [vmem:[#allocation5 + $0x10] sm:$0xff]
    %v144 = vld [vmem:[#allocation5 + $0x18] sm:$0xff]
    %v146 = vsel %vm65, %v139, 0
    %148 = vmatprep.subr.mxu0 0.0
    %149 = vmatpush1.msra.mxu0 0.0
    %150 = vmatprep.subr.mxu0 0.0
    %151 = vmatpush1.msra.mxu0 0.0
    %152 = vmatprep.subr.mxu0 0.0
    %153 = vmatpush1.msra.mxu0 0.0
    %154 = vmatprep.subr.mxu0 0.0
    %155 = vmatpush1.msra.mxu0 0.0
    %156 = vmatprep.subr.mxu0 0.0
    %157 = vmatpush1.msra.mxu0 0.0
    %158 = vmatprep.subr.mxu0 0.0
    %159 = vmatpush1.msra.mxu0 0.0
    %160 = vmatprep.subr.mxu0 0.0
    %161 = vmatpush1.msra.mxu0 0.0
    %162 = vmatprep.subr.mxu0 0.0
    %163 = vmatpush1.msra.mxu0 0.0
    %164 = vmatprep.subr.mxu0 0.0
    %165 = vmatpush1.msra.mxu0 0.0
    %166 = vmatprep.subr.mxu0 0.0
    %167 = vmatpush1.msra.mxu0 0.0
    %168 = vmatprep.subr.mxu0 0.0
    %169 = vmatpush1.msra.mxu0 0.0
    %170 = vmatprep.subr.mxu0 0.0
    %171 = vmatpush1.msra.mxu0 0.0
    %172 = vmatprep.subr.mxu0 0.0
    %173 = vmatpush1.msra.mxu0 %v144
    %174 = vmatprep.subr.mxu0 0.0
    %175 = vmatpush1.msra.mxu0 %v143
    %176 = vmatprep.subr.mxu0 0.0
    %177 = vmatpush1.msra.mxu0 %v142
    %178 = vmatprep.subr.mxu0 0.0
    %179 = vmatpush1.msra.mxu0 %v141
    %180 = vmatprep.subr.mxu0 0.0
    %181 = vmatpush2.msra.mxu0 0.0
    %182 = vmatprep.subr.mxu0 0.0
    %183 = vmatpush2.msra.mxu0 0.0
    %184 = vmatprep.subr.mxu0 0.0
    %185 = vmatpush2.msra.mxu0 0.0
    %186 = vmatprep.subr.mxu0 0.0
    %187 = vmatpush2.msra.mxu0 0.0
    %188 = vmatprep.subr.mxu0 0.0
    %189 = vmatpush2.msra.mxu0 0.0
    %190 = vmatprep.subr.mxu0 0.0
    %191 = vmatpush2.msra.mxu0 0.0
    %192 = vmatprep.subr.mxu0 0.0
    %193 = vmatpush2.msra.mxu0 0.0
    %194 = vmatprep.subr.mxu0 0.0
    %195 = vmatpush2.msra.mxu0 0.0
    %196 = vmatprep.subr.mxu0 0.0
    %197 = vmatpush2.msra.mxu0 0.0
    %198 = vmatprep.subr.mxu0 0.0
    %199 = vmatpush2.msra.mxu0 0.0
    %200 = vmatprep.subr.mxu0 0.0
    %201 = vmatpush2.msra.mxu0 0.0
    %202 = vmatprep.subr.mxu0 0.0
    %203 = vmatpush2.msra.mxu0 0.0
    %204 = vmatprep.subr.mxu0 0.0
    %205 = vmatpush2.msra.mxu0 0.0
    %206 = vmatprep.subr.mxu0 0.0
    %207 = vmatpush2.msra.mxu0 0.0
    %208 = vmatprep.subr.mxu0 0.0
    %209 = vmatpush2.msra.mxu0 0.0
    %210 = vmatprep.subr.mxu0 0.0
    %211 = vmatpush2.msra.mxu0 0.0
    %212 = vmatprep.mubr.f32.mxu0 0.0
    %213 = vmatmul.mubr.f32.gmra.mxu0 %v146
    %v214 = vpop.f32.mrf.mxu0
    %v215 = vadd.f32 0.0, %v214
    %v216 = vpop.f32.mrf.mxu0
    %217 = vdwg.mxu0
    %v218 = vadd.f32 %v140, %v215
    %219 = vst [vmem:[#allocation2] sm:$0xff] %v218
    // Predicated region
    $region34: #{_forward_impl.1} parent=1 // pred_check
      %p220 = pneg %p48
    $region35: #{_forward_impl.1} parent=1 // pred_check_branch
      %222 = sbr.rel (%p220) target = $region37
    $region36: #{_forward_impl.1} parent=1 // pred_region
      %v223 = vld [vmem:[#allocation2] sm:$0xff]
      %v224 = vld [vmem:[%s4] sm:$0x1]
      %v226 = vlaneseq
      %v227 = vshrl.u32 %v226, 7
      %v228 = vsub.s32 0, %v227
      %v229 = vrot.slane %v224, %v228
      %v231 = vadd.f32 %v223, %v229
      %232 = vst [vmem:[%s5] sm:$0xff] %v231
    $region37: #{_forward_impl.1} parent=1 // pred_fallthru
      _
    // Predicated region
    $region38: #{_forward_impl.1} parent=1 // pred_check
      _
    $region39: #{_forward_impl.1} parent=1 // pred_check_branch
      %234 = sbr.rel (0) target = $region41
    $region40: #{_forward_impl.1} parent=1 // pred_region
      _
    $region41: #{_forward_impl.1} parent=1 // pred_fallthru
      _
    // Predicated region
    $region42: #{_forward_impl.1} parent=1 // pred_check
      _
    $region43: #{_forward_impl.1} parent=1 // pred_check_branch
      %236 = sbr.rel (0) target = $region45
    $region44: #{_forward_impl.1} parent=1 // pred_region
      _
    $region45: #{_forward_impl.1} parent=1 // pred_fallthru
      _
    %237 = vsyncpa [#allocation4], 1
    %238 = vsyncpa [#allocation6], 1

</llo_original>
